<compile_context>
chip_gen: v6e
topology: v6e:2x2x1
jax: 0.10.0
libtpu: 0.0.40
codegen_flags: <defaults>
</compile_context>

<pallas_src>
import jax
import jax.numpy as jnp
import numpy as np
from jax.experimental import pallas as pl
from jax.experimental.pallas import tpu as pltpu

_LANE = 128
_SUBLANE = 8
# Double-buffered input budget (2 in-flight tiles).  4 MiB per tile keeps the
# pipeline near the HBM roofline while total VMEM stays well under every
# generation's scoped default (v5e 16 MiB, v6e/v7x 32 MiB).
_DEFAULT_VMEM_INPUT_BUDGET = 8 * 1024 * 1024


def _round_up(x, m):
    return -(-x // m) * m


def _pool_matmul_kernel(pt_ref, x_ref, o_ref):
    # pt_ref: (HW, R) pooling matrix transpose in x.dtype; same block every
    #         grid step -> stays resident in VMEM.
    # x_ref:  (nc_tile, HW) feature tile in its natural layout, streamed
    #         straight from HBM (no wrapper transpose) and fed to the MXU
    #         without any in-kernel dtype cast.
    # o_ref:  (nc_tile, R) pooled tile.
    o_ref[...] = jnp.dot(
        x_ref[...], pt_ref[...], preferred_element_type=jnp.float32
    ).astype(o_ref.dtype)


def _adaptive_windows(in_size, out_size):
    """[start, end) window per output index, matching nn.AdaptiveAvgPool2d."""
    return [((o * in_size) // out_size, -(-((o + 1) * in_size) // out_size))
            for o in range(out_size)]


def _build_pool_matrix_T(H, W, out_h, out_w):
    """(H*W, out_h*out_w) matrix; column oi*out_w+oj averages window (oi, oj)."""
    PT = np.zeros((H * W, out_h * out_w), dtype=np.float32)
    r = 0
    for (hs, he) in _adaptive_windows(H, out_h):
        for (ws, we) in _adaptive_windows(W, out_w):
            inv = 1.0 / float((he - hs) * (we - ws))
            for h in range(hs, he):
                PT[h * W + ws: h * W + we, r] = inv
            r += 1
    return PT


def adaptive_avg_pool2d(x, out_hw=(1, 1), *, nc_tile=None,
                        vmem_input_budget=_DEFAULT_VMEM_INPUT_BUDGET):
    """Pallas adaptive average pooling.

    x: (N, C, H, W).  Returns (N, C, out_h, out_w); out_hw=(1, 1) reproduces the
    AdaptiveAvgPool2d(1) head of ResNetFeatureExtractor.
    """
    N, C, H, W = x.shape
    out_h, out_w = out_hw
    NC, HW, R = N * C, H * W, out_h * out_w
    itemsize = jnp.dtype(x.dtype).itemsize

    # (N, C, H, W) -> (NC, HW): contiguous reshape, no HBM copy.
    x2 = x.reshape(NC, HW)

    # VMEM cost per tile row accounts for lane padding (HW -> round_up(HW,128)
    # lanes) even though the HBM DMA only moves the real HW columns.
    hw_lanes = _round_up(HW, _LANE)
    per_row = 2 * hw_lanes * itemsize            # double-buffered input row
    if nc_tile is None:
        nc_tile = max(_SUBLANE,
                      (vmem_input_budget // per_row) // _SUBLANE * _SUBLANE)
        # Keep >=2 grid steps whenever NC allows so v7x's two TensorCores can
        # split the "parallel" axis (neutral on single-core v5e/v6e).
        half = max(_SUBLANE,
                   _round_up(pl.cdiv(_round_up(NC, _SUBLANE), 2), _SUBLANE))
        nc_tile = min(nc_tile, half)
    nc_tile = min(_round_up(nc_tile, _SUBLANE), _round_up(NC, _SUBLANE))

    nc_full = _round_up(NC, nc_tile)
    if nc_full != NC:
        # Single pad (only when needed).  Padded rows only produce extra
        # output rows that are sliced off below; they never touch real rows.
        x2 = jnp.pad(x2, ((0, nc_full - NC), (0, 0)))
    grid = (nc_full // nc_tile,)

    # P^T in x.dtype: the big streamed operand needs no in-kernel cast; the
    # MXU still accumulates in f32 via preferred_element_type.
    PT = jnp.asarray(_build_pool_matrix_T(H, W, out_h, out_w), dtype=x.dtype)

    out = pl.pallas_call(
        _pool_matmul_kernel,
        out_shape=jax.ShapeDtypeStruct((nc_full, R), x.dtype),
        grid=grid,
        in_specs=[
            pl.BlockSpec((HW, R), lambda i: (0, 0)),        # P^T, resident
            pl.BlockSpec((nc_tile, HW), lambda i: (i, 0)),  # feature tile
        ],
        out_specs=pl.BlockSpec((nc_tile, R), lambda i: (i, 0)),
        compiler_params=pltpu.CompilerParams(
            dimension_semantics=("parallel",),
        ),
        cost_estimate=pl.CostEstimate(
            flops=2 * NC * HW * R,
            transcendentals=0,
            bytes_accessed=(NC * HW + NC * R + HW * R) * itemsize,
        ),
    )(PT, x2)

    return out[:NC].reshape(N, C, out_h, out_w)


def adaptive_avg_pool2d_ref(x, out_hw=(1, 1)):
    """Pure-JAX reference matching nn.AdaptiveAvgPool2d."""
    out_h, out_w = out_hw
    rows = []
    for (hs, he) in _adaptive_windows(x.shape[-2], out_h):
        cols = []
        for (ws, we) in _adaptive_windows(x.shape[-1], out_w):
            cols.append(x[..., hs:he, ws:we].mean(axis=(-2, -1)))
        rows.append(jnp.stack(cols, axis=-1))
    return jnp.stack(rows, axis=-2)                              # (N, C, oh, ow)


if __name__ == "__main__":
    key = jax.random.PRNGKey(0)
    k1, k2 = jax.random.split(key)

    # Miniature ResNet-50 layer4-style feature map (N, C, H/32, W/32).
    x = jax.random.normal(k1, (2, 256, 8, 8), dtype=jnp.float32)
    out = jax.block_until_ready(adaptive_avg_pool2d(x, (1, 1)))
    ref = adaptive_avg_pool2d_ref(x, (1, 1))
    assert out.shape == ref.shape == (2, 256, 1, 1), (out.shape, ref.shape)
    assert jnp.allclose(out, ref, atol=1e-5, rtol=1e-5), float(jnp.abs(out - ref).max())

    # Odd shapes exercise the single-pad NC path and a non-multiple-of-8 HW.
    y = jax.random.normal(k2, (2, 100, 7, 7), dtype=jnp.float32)
    out2 = jax.block_until_ready(adaptive_avg_pool2d(y, (1, 1)))
    ref2 = adaptive_avg_pool2d_ref(y, (1, 1))
    assert out2.shape == ref2.shape == (2, 100, 1, 1), (out2.shape, ref2.shape)
    assert jnp.allclose(out2, ref2, atol=1e-5, rtol=1e-5), float(jnp.abs(out2 - ref2).max())

    print("KERNEL_OK")
</pallas_src>

<mosaic_0001>
module attributes {stable_mosaic.version = 11 : i64} {
  func.func @_pool_matmul_kernel(%arg0: i32, %arg1: memref<64x1xf32, #tpu.memory_space<vmem>>, %arg2: memref<256x64xf32, #tpu.memory_space<vmem>>, %arg3: memref<256x1xf32, #tpu.memory_space<vmem>>) attributes {dimension_semantics = [#tpu.dimension_semantics<parallel>], iteration_bounds = array<i64: 2>, scalar_prefetch = 0 : i64, scratch_operands = 0 : i64, tpu.core_type = #tpu.core_type<tc>, window_params = [{pipeline_mode = #tpu.pipeline_mode<synchronous>, transform_indices = @transform_0, window_bounds = array<i64: 64, 1>}, {transform_indices = @transform_1, window_bounds = array<i64: 256, 64>}, {transform_indices = @transform_2, window_bounds = array<i64: 256, 1>}]} {
    %c0 = arith.constant 0 : index
    %c0_0 = arith.constant 0 : index
    %0 = vector.load %arg2[%c0, %c0_0] : memref<256x64xf32, #tpu.memory_space<vmem>>, vector<256x64xf32>
    %c0_1 = arith.constant 0 : index
    %c0_2 = arith.constant 0 : index
    %1 = vector.load %arg1[%c0_1, %c0_2] : memref<64x1xf32, #tpu.memory_space<vmem>>, vector<64x1xf32>
    %cst = arith.constant dense<0.000000e+00> : vector<256x1xf32>
    %2 = tpu.matmul %0, %1, %cst {dimension_numbers = #tpu.dot_dimension_numbers<[1], [0], [0], [1], [0, 0, 1, 1], [], []>} : vector<256x64xf32>, vector<64x1xf32>, vector<256x1xf32> -> vector<256x1xf32>
    %c0_3 = arith.constant 0 : index
    %c0_4 = arith.constant 0 : index
    %3 = vector.load %arg3[%c0_3, %c0_4] : memref<256x1xf32, #tpu.memory_space<vmem>>, vector<256x1xf32>
    tpu.vector_store %arg3[%c0_3, %c0_4], %2 {strides = array<i32>} : memref<256x1xf32, #tpu.memory_space<vmem>>, vector<256x1xf32>,
    return
  }
  func.func @transform_0(%arg0: i32) -> (i32, i32) {
    %c0_i32 = arith.constant 0 : i32
    %c0_i32_0 = arith.constant 0 : i32
    %c0_i32_1 = arith.constant 0 : i32
    return %c0_i32, %c0_i32_0 : i32, i32
  }
  func.func @transform_1(%arg0: i32) -> (i32, i32) {
    %c0_i32 = arith.constant 0 : i32
    %c0_i32_0 = arith.constant 0 : i32
    return %arg0, %c0_i32 : i32, i32
  }
  func.func @transform_2(%arg0: i32) -> (i32, i32) {
    %c0_i32 = arith.constant 0 : i32
    %c0_i32_0 = arith.constant 0 : i32
    return %arg0, %c0_i32 : i32, i32
  }
}

</mosaic_0001>

<llo_original>
// kernel: tpu_custom_call.1
$region0: #{tpu_custom_call.1}
  #allocation0 [shape = 'u32[]', space=smem, size = 0x4, offset = 0x4, fixed_abs, tag = 'smem constant byte address 0x4 - core index']
  #allocation1 [shape = 'u32[144,128]{1,0:T(1,128)}', space=vmem, size = 0x12000, scoped, tag = 'internal scratch']
  %s0 = inlined_call_operand.vmem [shape: f32[64,1], index: 0, kind: input, shape index: {}]
  %s1 = inlined_call_operand.vmem [shape: f32[512,64], index: 1, kind: input, shape index: {}]
  %s2 = inlined_call_operand.vmem [shape: f32[512,1], index: 2, kind: output, shape index: {}]
  %s3 = sld [smem:[#allocation0]]
  $region41: #{tpu_custom_call.1} parent=0
    _
  %s5 = ssub.s32 1, %s3
  %s6 = scalar_select 0, %s5, %s3
  loop: start=0, step=1, limit=4
  $region2: #{tpu_custom_call.1} parent=0 // loop_pre_header
    _
  $region3: #{tpu_custom_call.1} parent=0 // loop_header
    %s8 = sphi 0, %s12
    %p9 = scmp.ge.s32.totalorder %s8, 4
    %s16 = sphi 0, %s16
    %s18 = sphi 0, %s16
    %s19 = sphi 0, %s18
    %s33 = sphi 0, %s19
    %s39 = sphi 0, %s41
    %s42 = sphi 0, %s39
    %s43 = sphi 0, %s42
    %s59 = sphi 0, %s43
    %s65 = sphi 0, %s67
    %s68 = sphi 0, %s65
    %s69 = sphi 0, %s68
    %s85 = sphi 0, %s69
  $region4: #{tpu_custom_call.1} parent=0 // loop_header_branch
    %11 = sbr.rel (%p9) target = $region8
  $region5: #{tpu_custom_call.1} parent=0 // loop_body
    %s13 = ssub.s32 %s8, 1
    %s14 = ssub.s32 %s8, 2
    %s15 = sadd.s32 %s8, 1
    %s17 = sadd.s32 %s16, 1
    %p20 = scmp.eq.s32.totalorder %s8, 1
    %p21 = scmp.ne.s32.totalorder %s16, %s18
    %p22 = scmp.eq.s32.totalorder %s8, 0
    %p23 = por %p21, %p22
    %p24 = scmp.ne.s32.totalorder %s16, %s18
    %p25 = scmp.eq.s32.totalorder %s13, 1
    %p26 = por %p24, %p25
    %p27 = scmp.ne.s32.totalorder %s18, %s19
    %p28 = scmp.eq.s32.totalorder %s13, 0
    %p29 = por %p27, %p28
    %p30 = scmp.ne.s32.totalorder %s18, %s19
    %p31 = scmp.eq.s32.totalorder %s14, 1
    %p32 = por %p30, %p31
    %p34 = scmp.ne.s32.totalorder %s19, %s33
    %p35 = scmp.eq.s32.totalorder %s14, 0
    %p36 = por %p34, %p35
    %s37 = ssub.s32 %s8, %s15
    %p38 = scmp.eq.s32.totalorder %s37, 0
    %s40 = sadd.s32 %s39, 1
    %s41 = scalar_select %p38, %s39, %s40
    %p44 = pneg %p38
    %p45 = scmp.eq.s32.totalorder %s8, 1
    %p46 = por %p44, %p45
    %p47 = scmp.ne.s32.totalorder %s39, %s42
    %p48 = scmp.eq.s32.totalorder %s8, 0
    %p49 = por %p47, %p48
    %p50 = scmp.ne.s32.totalorder %s39, %s42
    %p51 = scmp.eq.s32.totalorder %s13, 1
    %p52 = por %p50, %p51
    %p53 = scmp.ne.s32.totalorder %s42, %s43
    %p54 = scmp.eq.s32.totalorder %s13, 0
    %p55 = por %p53, %p54
    %p56 = scmp.ne.s32.totalorder %s42, %s43
    %p57 = scmp.eq.s32.totalorder %s14, 1
    %p58 = por %p56, %p57
    %p60 = scmp.ne.s32.totalorder %s43, %s59
    %p61 = scmp.eq.s32.totalorder %s14, 0
    %p62 = por %p60, %p61
    %s63 = ssub.s32 %s8, %s15
    %p64 = scmp.eq.s32.totalorder %s63, 0
    %s66 = sadd.s32 %s65, 1
    %s67 = scalar_select %p64, %s65, %s66
    %p70 = pneg %p64
    %p71 = scmp.eq.s32.totalorder %s8, 1
    %p72 = por %p70, %p71
    %p73 = scmp.ne.s32.totalorder %s65, %s68
    %p74 = scmp.eq.s32.totalorder %s8, 0
    %p75 = por %p73, %p74
    %p76 = scmp.ne.s32.totalorder %s65, %s68
    %p77 = scmp.eq.s32.totalorder %s13, 1
    %p78 = por %p76, %p77
    %p79 = scmp.ne.s32.totalorder %s68, %s69
    %p80 = scmp.eq.s32.totalorder %s13, 0
    %p81 = por %p79, %p80
    %p82 = scmp.ne.s32.totalorder %s68, %s69
    %p83 = scmp.eq.s32.totalorder %s14, 1
    %p84 = por %p82, %p83
    %p86 = scmp.ne.s32.totalorder %s69, %s85
    %p87 = scmp.eq.s32.totalorder %s14, 0
    %p88 = por %p86, %p87
    %p89 = scmp.le.s32.totalorder 1, %s8
    %p90 = scmp.lt.s32.totalorder %s8, 3
    %p91 = pnand %p89, %p90
    %p92 = pneg %p91
    // Predicated region
    $region9: #{tpu_custom_call.1} parent=5 // pred_check
      _
    $region10: #{tpu_custom_call.1} parent=5 // pred_check_branch
      %94 = sbr.rel (%p91) target = $region12
    $region11: #{tpu_custom_call.1} parent=5 // pred_region
      %s95 = ssub.s32 %s8, 1
      // Predicated region
      $region13: #{tpu_custom_call.1} parent=11 // pred_check
        %p96 = pneg %p29
      $region14: #{tpu_custom_call.1} parent=11 // pred_check_branch
        %98 = sbr.rel (%p96) target = $region16
      $region15: #{tpu_custom_call.1} parent=11 // pred_region
        _
      $region16: #{tpu_custom_call.1} parent=11 // pred_fallthru
        _
    $region12: #{tpu_custom_call.1} parent=5 // pred_fallthru
      _
    %p99 = scmp.lt.s32.totalorder %s8, 2
    // Predicated region
    $region17: #{tpu_custom_call.1} parent=5 // pred_check
      %p100 = pneg %p99
    $region18: #{tpu_custom_call.1} parent=5 // pred_check_branch
      %102 = sbr.rel (%p100) target = $region20
    $region19: #{tpu_custom_call.1} parent=5 // pred_region
      // Predicated region
      $region21: #{tpu_custom_call.1} parent=19 // pred_check
        %p103 = pneg %p49
      $region22: #{tpu_custom_call.1} parent=19 // pred_check_branch
        %105 = sbr.rel (%p103) target = $region24
      $region23: #{tpu_custom_call.1} parent=19 // pred_region
        %s106 = smul.u32 32, %s8
        %p107 = scmp.lt.s32.totalorder %s106, 63
        %s108 = scalar_select %p107, %s106, 63
        %s109 = smul.addr %s108, 8
        %s110 = scalar_lea.vmem %s1, %s109
        %s111 = smul.u32 32, %s8
      $region24: #{tpu_custom_call.1} parent=19 // pred_fallthru
        _
    $region20: #{tpu_custom_call.1} parent=5 // pred_fallthru
      _
    %p112 = scmp.le.s32.totalorder 1, %s8
    %p113 = scmp.lt.s32.totalorder %s8, 3
    %p114 = pnand %p112, %p113
    %p115 = pneg %p114
    // Predicated region
    $region25: #{tpu_custom_call.1} parent=5 // pred_check
      _
    $region26: #{tpu_custom_call.1} parent=5 // pred_check_branch
      %117 = sbr.rel (%p114) target = $region28
    $region27: #{tpu_custom_call.1} parent=5 // pred_region
      %s118 = ssub.s32 %s8, 1
      %p119 = pneg %p29
      %p120 = pneg %p26
      %s121 = smul.u32 32, %s13
      %p122 = scmp.lt.s32.totalorder %s121, 63
      %s123 = scalar_select %p122, %s121, 63
      %s124 = smul.addr %s123, 8
      %s125 = scalar_lea.vmem %s1, %s124
      %p126 = pneg %p55
      %p127 = pneg %p52
      %p128 = pneg %p81
      %p129 = pneg %p78
      %s130 = smul.u32 32, %s13
      %p131 = scmp.lt.s32.totalorder %s130, 63
      %s132 = scalar_select %p131, %s130, 63
      %s133 = smul.addr %s132, 8
      %s134 = scalar_lea.vmem %s2, %s133
      %s135 = smul.u32 32, %s13
      %p136 = scmp.lt.s32.totalorder %s135, 63
      %s137 = scalar_select %p136, %s135, 63
      %s138 = smul.addr %s137, 8
      %s139 = scalar_lea.vmem %s1, %s138
      %s140 = smul.u32 32, %s13
      %s141 = smul.u32 32, %s13
      %p142 = scmp.lt.s32.totalorder %s141, 63
      %s143 = scalar_select %p142, %s141, 63
      %s144 = smul.addr %s143, 8
      %s145 = scalar_lea.vmem %s2, %s144
      %s146 = smul.u32 32, %s13
      %v147 = vld [vmem:[%s139] sm:$0xff]
      %v148 = vld [vmem:[%s139 + $0x8] sm:$0xff]
      %v149 = vld [vmem:[%s139 + $0x10] sm:$0xff]
      %v150 = vld [vmem:[%s139 + $0x18] sm:$0xff]
      %v151 = vld [vmem:[%s139 + $0x20] sm:$0xff]
      %v152 = vld [vmem:[%s139 + $0x28] sm:$0xff]
      %v153 = vld [vmem:[%s139 + $0x30] sm:$0xff]
      %v154 = vld [vmem:[%s139 + $0x38] sm:$0xff]
      %v155 = vld [vmem:[%s139 + $0x40] sm:$0xff]
      %v156 = vld [vmem:[%s139 + $0x48] sm:$0xff]
      %v157 = vld [vmem:[%s139 + $0x50] sm:$0xff]
      %v158 = vld [vmem:[%s139 + $0x58] sm:$0xff]
      %v159 = vld [vmem:[%s139 + $0x60] sm:$0xff]
      %v160 = vld [vmem:[%s139 + $0x68] sm:$0xff]
      %v161 = vld [vmem:[%s139 + $0x70] sm:$0xff]
      %v162 = vld [vmem:[%s139 + $0x78] sm:$0xff]
      %v163 = vld [vmem:[%s139 + $0x80] sm:$0xff]
      %v164 = vld [vmem:[%s139 + $0x88] sm:$0xff]
      %v165 = vld [vmem:[%s139 + $0x90] sm:$0xff]
      %v166 = vld [vmem:[%s139 + $0x98] sm:$0xff]
      %v167 = vld [vmem:[%s139 + $0xa0] sm:$0xff]
      %v168 = vld [vmem:[%s139 + $0xa8] sm:$0xff]
      %v169 = vld [vmem:[%s139 + $0xb0] sm:$0xff]
      %v170 = vld [vmem:[%s139 + $0xb8] sm:$0xff]
      %v171 = vld [vmem:[%s139 + $0xc0] sm:$0xff]
      %v172 = vld [vmem:[%s139 + $0xc8] sm:$0xff]
      %v173 = vld [vmem:[%s139 + $0xd0] sm:$0xff]
      %v174 = vld [vmem:[%s139 + $0xd8] sm:$0xff]
      %v175 = vld [vmem:[%s139 + $0xe0] sm:$0xff]
      %v176 = vld [vmem:[%s139 + $0xe8] sm:$0xff]
      %v177 = vld [vmem:[%s139 + $0xf0] sm:$0xff]
      %v178 = vld [vmem:[%s139 + $0xf8] sm:$0xff]
      %v179 = vld [vmem:[%s0] sm:$0xff]
      %v180 = vld [vmem:[%s0 + $0x8] sm:$0xff]
      %v181 = vld [vmem:[%s0 + $0x10] sm:$0xff]
      %v182 = vld [vmem:[%s0 + $0x18] sm:$0xff]
      %v183 = vld [vmem:[%s0 + $0x20] sm:$0xff]
      %v184 = vld [vmem:[%s0 + $0x28] sm:$0xff]
      %v185 = vld [vmem:[%s0 + $0x30] sm:$0xff]
      %v186 = vld [vmem:[%s0 + $0x38] sm:$0xff]
      %vm187 = vcmask 523264
      %v189 = vsel %vm187, %v147, 0
      %v192 = vsel %vm187, %v148, 0
      %v195 = vsel %vm187, %v149, 0
      %v198 = vsel %vm187, %v150, 0
      %v201 = vsel %vm187, %v151, 0
      %v204 = vsel %vm187, %v152, 0
      %v207 = vsel %vm187, %v153, 0
      %v210 = vsel %vm187, %v154, 0
      %v213 = vsel %vm187, %v155, 0
      %v216 = vsel %vm187, %v156, 0
      %v219 = vsel %vm187, %v157, 0
      %v222 = vsel %vm187, %v158, 0
      %v225 = vsel %vm187, %v159, 0
      %v228 = vsel %vm187, %v160, 0
      %v231 = vsel %vm187, %v161, 0
      %v234 = vsel %vm187, %v162, 0
      %v237 = vsel %vm187, %v163, 0
      %v240 = vsel %vm187, %v164, 0
      %v243 = vsel %vm187, %v165, 0
      %v246 = vsel %vm187, %v166, 0
      %v249 = vsel %vm187, %v167, 0
      %v252 = vsel %vm187, %v168, 0
      %v255 = vsel %vm187, %v169, 0
      %v258 = vsel %vm187, %v170, 0
      %v261 = vsel %vm187, %v171, 0
      %v264 = vsel %vm187, %v172, 0
      %v267 = vsel %vm187, %v173, 0
      %v270 = vsel %vm187, %v174, 0
      %v273 = vsel %vm187, %v175, 0
      %v276 = vsel %vm187, %v176, 0
      %v279 = vsel %vm187, %v177, 0
      %v282 = vsel %vm187, %v178, 0
      %284 = vmatprep.subr.mxu0 0.0
      %285 = vmatpush1.msra.mxu0 0.0
      %286 = vmatprep.subr.mxu0 0.0
      %287 = vmatpush1.msra.mxu0 0.0
      %288 = vmatprep.subr.mxu0 0.0
      %289 = vmatpush1.msra.mxu0 0.0
      %290 = vmatprep.subr.mxu0 0.0
      %291 = vmatpush1.msra.mxu0 0.0
      %292 = vmatprep.subr.mxu0 0.0
      %293 = vmatpush1.msra.mxu0 0.0
      %294 = vmatprep.subr.mxu0 0.0
      %295 = vmatpush1.msra.mxu0 0.0
      %296 = vmatprep.subr.mxu0 0.0
      %297 = vmatpush1.msra.mxu0 0.0
      %298 = vmatprep.subr.mxu0 0.0
      %299 = vmatpush1.msra.mxu0 0.0
      %300 = vmatprep.subr.mxu0 0.0
      %301 = vmatpush1.msra.mxu0 %v186
      %302 = vmatprep.subr.mxu0 0.0
      %303 = vmatpush1.msra.mxu0 %v185
      %304 = vmatprep.subr.mxu0 0.0
      %305 = vmatpush1.msra.mxu0 %v184
      %306 = vmatprep.subr.mxu0 0.0
      %307 = vmatpush1.msra.mxu0 %v183
      %308 = vmatprep.subr.mxu0 0.0
      %309 = vmatpush1.msra.mxu0 %v182
      %310 = vmatprep.subr.mxu0 0.0
      %311 = vmatpush1.msra.mxu0 %v181
      %312 = vmatprep.subr.mxu0 0.0
      %313 = vmatpush1.msra.mxu0 %v180
      %314 = vmatprep.subr.mxu0 0.0
      %315 = vmatpush1.msra.mxu0 %v179
      %316 = vmatprep.subr.mxu0 0.0
      %317 = vmatpush2.msra.mxu0 0.0
      %318 = vmatprep.subr.mxu0 0.0
      %319 = vmatpush2.msra.mxu0 0.0
      %320 = vmatprep.subr.mxu0 0.0
      %321 = vmatpush2.msra.mxu0 0.0
      %322 = vmatprep.subr.mxu0 0.0
      %323 = vmatpush2.msra.mxu0 0.0
      %324 = vmatprep.subr.mxu0 0.0
      %325 = vmatpush2.msra.mxu0 0.0
      %326 = vmatprep.subr.mxu0 0.0
      %327 = vmatpush2.msra.mxu0 0.0
      %328 = vmatprep.subr.mxu0 0.0
      %329 = vmatpush2.msra.mxu0 0.0
      %330 = vmatprep.subr.mxu0 0.0
      %331 = vmatpush2.msra.mxu0 0.0
      %332 = vmatprep.subr.mxu0 0.0
      %333 = vmatpush2.msra.mxu0 0.0
      %334 = vmatprep.subr.mxu0 0.0
      %335 = vmatpush2.msra.mxu0 0.0
      %336 = vmatprep.subr.mxu0 0.0
      %337 = vmatpush2.msra.mxu0 0.0
      %338 = vmatprep.subr.mxu0 0.0
      %339 = vmatpush2.msra.mxu0 0.0
      %340 = vmatprep.subr.mxu0 0.0
      %341 = vmatpush2.msra.mxu0 0.0
      %342 = vmatprep.subr.mxu0 0.0
      %343 = vmatpush2.msra.mxu0 0.0
      %344 = vmatprep.subr.mxu0 0.0
      %345 = vmatpush2.msra.mxu0 0.0
      %346 = vmatprep.subr.mxu0 0.0
      %347 = vmatpush2.msra.mxu0 0.0
      %348 = vmatprep.mubr.f32.mxu0 0.0
      %349 = vmatmul.mubr.f32.gmra.mxu0 %v189
      %v350 = vpop.f32.mrf.mxu0
      %v351 = vadd.f32 0.0, %v350
      %v352 = vpop.f32.mrf.mxu0
      %353 = vmatprep.mubr.f32.mxu0 0.0
      %354 = vmatmul.mubr.f32.gmra.mxu0 %v192
      %v355 = vpop.f32.mrf.mxu0
      %v356 = vadd.f32 0.0, %v355
      %v357 = vpop.f32.mrf.mxu0
      %358 = vmatprep.mubr.f32.mxu0 0.0
      %359 = vmatmul.mubr.f32.gmra.mxu0 %v195
      %v360 = vpop.f32.mrf.mxu0
      %v361 = vadd.f32 0.0, %v360
      %v362 = vpop.f32.mrf.mxu0
      %363 = vmatprep.mubr.f32.mxu0 0.0
      %364 = vmatmul.mubr.f32.gmra.mxu0 %v198
      %v365 = vpop.f32.mrf.mxu0
      %v366 = vadd.f32 0.0, %v365
      %v367 = vpop.f32.mrf.mxu0
      %368 = vmatprep.mubr.f32.mxu0 0.0
      %369 = vmatmul.mubr.f32.gmra.mxu0 %v201
      %v370 = vpop.f32.mrf.mxu0
      %v371 = vadd.f32 0.0, %v370
      %v372 = vpop.f32.mrf.mxu0
      %373 = vmatprep.mubr.f32.mxu0 0.0
      %374 = vmatmul.mubr.f32.gmra.mxu0 %v204
      %v375 = vpop.f32.mrf.mxu0
      %v376 = vadd.f32 0.0, %v375
      %v377 = vpop.f32.mrf.mxu0
      %378 = vmatprep.mubr.f32.mxu0 0.0
      %379 = vmatmul.mubr.f32.gmra.mxu0 %v207
      %v380 = vpop.f32.mrf.mxu0
      %v381 = vadd.f32 0.0, %v380
      %v382 = vpop.f32.mrf.mxu0
      %383 = vmatprep.mubr.f32.mxu0 0.0
      %384 = vmatmul.mubr.f32.gmra.mxu0 %v210
      %v385 = vpop.f32.mrf.mxu0
      %v386 = vadd.f32 0.0, %v385
      %v387 = vpop.f32.mrf.mxu0
      %388 = vmatprep.mubr.f32.mxu0 0.0
      %389 = vmatmul.mubr.f32.gmra.mxu0 %v213
      %v390 = vpop.f32.mrf.mxu0
      %v391 = vadd.f32 0.0, %v390
      %v392 = vpop.f32.mrf.mxu0
      %393 = vmatprep.mubr.f32.mxu0 0.0
      %394 = vmatmul.mubr.f32.gmra.mxu0 %v216
      %v395 = vpop.f32.mrf.mxu0
      %v396 = vadd.f32 0.0, %v395
      %v397 = vpop.f32.mrf.mxu0
      %398 = vmatprep.mubr.f32.mxu0 0.0
      %399 = vmatmul.mubr.f32.gmra.mxu0 %v219
      %v400 = vpop.f32.mrf.mxu0
      %v401 = vadd.f32 0.0, %v400
      %v402 = vpop.f32.mrf.mxu0
      %403 = vmatprep.mubr.f32.mxu0 0.0
      %404 = vmatmul.mubr.f32.gmra.mxu0 %v222
      %v405 = vpop.f32.mrf.mxu0
      %v406 = vadd.f32 0.0, %v405
      %v407 = vpop.f32.mrf.mxu0
      %408 = vmatprep.mubr.f32.mxu0 0.0
      %409 = vmatmul.mubr.f32.gmra.mxu0 %v225
      %v410 = vpop.f32.mrf.mxu0
      %v411 = vadd.f32 0.0, %v410
      %v412 = vpop.f32.mrf.mxu0
      %413 = vmatprep.mubr.f32.mxu0 0.0
      %414 = vmatmul.mubr.f32.gmra.mxu0 %v228
      %v415 = vpop.f32.mrf.mxu0
      %v416 = vadd.f32 0.0, %v415
      %v417 = vpop.f32.mrf.mxu0
      %418 = vmatprep.mubr.f32.mxu0 0.0
      %419 = vmatmul.mubr.f32.gmra.mxu0 %v231
      %v420 = vpop.f32.mrf.mxu0
      %v421 = vadd.f32 0.0, %v420
      %v422 = vpop.f32.mrf.mxu0
      %423 = vmatprep.mubr.f32.mxu0 0.0
      %424 = vmatmul.mubr.f32.gmra.mxu0 %v234
      %v425 = vpop.f32.mrf.mxu0
      %v426 = vadd.f32 0.0, %v425
      %v427 = vpop.f32.mrf.mxu0
      %428 = vmatprep.mubr.f32.mxu0 0.0
      %429 = vmatmul.mubr.f32.gmra.mxu0 %v237
      %v430 = vpop.f32.mrf.mxu0
      %v431 = vadd.f32 0.0, %v430
      %v432 = vpop.f32.mrf.mxu0
      %433 = vmatprep.mubr.f32.mxu0 0.0
      %434 = vmatmul.mubr.f32.gmra.mxu0 %v240
      %v435 = vpop.f32.mrf.mxu0
      %v436 = vadd.f32 0.0, %v435
      %v437 = vpop.f32.mrf.mxu0
      %438 = vmatprep.mubr.f32.mxu0 0.0
      %439 = vmatmul.mubr.f32.gmra.mxu0 %v243
      %v440 = vpop.f32.mrf.mxu0
      %v441 = vadd.f32 0.0, %v440
      %v442 = vpop.f32.mrf.mxu0
      %443 = vmatprep.mubr.f32.mxu0 0.0
      %444 = vmatmul.mubr.f32.gmra.mxu0 %v246
      %v445 = vpop.f32.mrf.mxu0
      %v446 = vadd.f32 0.0, %v445
      %v447 = vpop.f32.mrf.mxu0
      %448 = vmatprep.mubr.f32.mxu0 0.0
      %449 = vmatmul.mubr.f32.gmra.mxu0 %v249
      %v450 = vpop.f32.mrf.mxu0
      %v451 = vadd.f32 0.0, %v450
      %v452 = vpop.f32.mrf.mxu0
      %453 = vmatprep.mubr.f32.mxu0 0.0
      %454 = vmatmul.mubr.f32.gmra.mxu0 %v252
      %v455 = vpop.f32.mrf.mxu0
      %v456 = vadd.f32 0.0, %v455
      %v457 = vpop.f32.mrf.mxu0
      %458 = vmatprep.mubr.f32.mxu0 0.0
      %459 = vmatmul.mubr.f32.gmra.mxu0 %v255
      %v460 = vpop.f32.mrf.mxu0
      %v461 = vadd.f32 0.0, %v460
      %v462 = vpop.f32.mrf.mxu0
      %463 = vmatprep.mubr.f32.mxu0 0.0
      %464 = vmatmul.mubr.f32.gmra.mxu0 %v258
      %v465 = vpop.f32.mrf.mxu0
      %v466 = vadd.f32 0.0, %v465
      %v467 = vpop.f32.mrf.mxu0
      %468 = vmatprep.mubr.f32.mxu0 0.0
      %469 = vmatmul.mubr.f32.gmra.mxu0 %v261
      %v470 = vpop.f32.mrf.mxu0
      %v471 = vadd.f32 0.0, %v470
      %v472 = vpop.f32.mrf.mxu0
      %473 = vmatprep.mubr.f32.mxu0 0.0
      %474 = vmatmul.mubr.f32.gmra.mxu0 %v264
      %v475 = vpop.f32.mrf.mxu0
      %v476 = vadd.f32 0.0, %v475
      %v477 = vpop.f32.mrf.mxu0
      %478 = vmatprep.mubr.f32.mxu0 0.0
      %479 = vmatmul.mubr.f32.gmra.mxu0 %v267
      %v480 = vpop.f32.mrf.mxu0
      %v481 = vadd.f32 0.0, %v480
      %v482 = vpop.f32.mrf.mxu0
      %483 = vmatprep.mubr.f32.mxu0 0.0
      %484 = vmatmul.mubr.f32.gmra.mxu0 %v270
      %v485 = vpop.f32.mrf.mxu0
      %v486 = vadd.f32 0.0, %v485
      %v487 = vpop.f32.mrf.mxu0
      %488 = vmatprep.mubr.f32.mxu0 0.0
      %489 = vmatmul.mubr.f32.gmra.mxu0 %v273
      %v490 = vpop.f32.mrf.mxu0
      %v491 = vadd.f32 0.0, %v490
      %v492 = vpop.f32.mrf.mxu0
      %493 = vmatprep.mubr.f32.mxu0 0.0
      %494 = vmatmul.mubr.f32.gmra.mxu0 %v276
      %v495 = vpop.f32.mrf.mxu0
      %v496 = vadd.f32 0.0, %v495
      %v497 = vpop.f32.mrf.mxu0
      %498 = vmatprep.mubr.f32.mxu0 0.0
      %499 = vmatmul.mubr.f32.gmra.mxu0 %v279
      %v500 = vpop.f32.mrf.mxu0
      %v501 = vadd.f32 0.0, %v500
      %v502 = vpop.f32.mrf.mxu0
      %503 = vmatprep.mubr.f32.mxu0 0.0
      %504 = vmatmul.mubr.f32.gmra.mxu0 %v282
      %v505 = vpop.f32.mrf.mxu0
      %v506 = vadd.f32 0.0, %v505
      %v507 = vpop.f32.mrf.mxu0
      %508 = vdwg.mxu0
      %vm509 = vcmask 7168
      %510 = vst.msk [vmem:[%s145] sm:$0xff] %vm509, %v351
      %511 = vst.msk [vmem:[%s145 + $0x8] sm:$0xff] %vm509, %v356
      %512 = vst.msk [vmem:[%s145 + $0x10] sm:$0xff] %vm509, %v361
      %513 = vst.msk [vmem:[%s145 + $0x18] sm:$0xff] %vm509, %v366
      %514 = vst.msk [vmem:[%s145 + $0x20] sm:$0xff] %vm509, %v371
      %515 = vst.msk [vmem:[%s145 + $0x28] sm:$0xff] %vm509, %v376
      %516 = vst.msk [vmem:[%s145 + $0x30] sm:$0xff] %vm509, %v381
      %517 = vst.msk [vmem:[%s145 + $0x38] sm:$0xff] %vm509, %v386
      %518 = vst.msk [vmem:[%s145 + $0x40] sm:$0xff] %vm509, %v391
      %519 = vst.msk [vmem:[%s145 + $0x48] sm:$0xff] %vm509, %v396
      %520 = vst.msk [vmem:[%s145 + $0x50] sm:$0xff] %vm509, %v401
      %521 = vst.msk [vmem:[%s145 + $0x58] sm:$0xff] %vm509, %v406
      %522 = vst.msk [vmem:[%s145 + $0x60] sm:$0xff] %vm509, %v411
      %523 = vst.msk [vmem:[%s145 + $0x68] sm:$0xff] %vm509, %v416
      %524 = vst.msk [vmem:[%s145 + $0x70] sm:$0xff] %vm509, %v421
      %525 = vst.msk [vmem:[%s145 + $0x78] sm:$0xff] %vm509, %v426
      %526 = vst.msk [vmem:[%s145 + $0x80] sm:$0xff] %vm509, %v431
      %527 = vst.msk [vmem:[%s145 + $0x88] sm:$0xff] %vm509, %v436
      %528 = vst.msk [vmem:[%s145 + $0x90] sm:$0xff] %vm509, %v441
      %529 = vst.msk [vmem:[%s145 + $0x98] sm:$0xff] %vm509, %v446
      %530 = vst.msk [vmem:[%s145 + $0xa0] sm:$0xff] %vm509, %v451
      %531 = vst.msk [vmem:[%s145 + $0xa8] sm:$0xff] %vm509, %v456
      %532 = vst.msk [vmem:[%s145 + $0xb0] sm:$0xff] %vm509, %v461
      %533 = vst.msk [vmem:[%s145 + $0xb8] sm:$0xff] %vm509, %v466
      %534 = vst.msk [vmem:[%s145 + $0xc0] sm:$0xff] %vm509, %v471
      %535 = vst.msk [vmem:[%s145 + $0xc8] sm:$0xff] %vm509, %v476
      %536 = vst.msk [vmem:[%s145 + $0xd0] sm:$0xff] %vm509, %v481
      %537 = vst.msk [vmem:[%s145 + $0xd8] sm:$0xff] %vm509, %v486
      %538 = vst.msk [vmem:[%s145 + $0xe0] sm:$0xff] %vm509, %v491
      %539 = vst.msk [vmem:[%s145 + $0xe8] sm:$0xff] %vm509, %v496
      %540 = vst.msk [vmem:[%s145 + $0xf0] sm:$0xff] %vm509, %v501
      %541 = vst.msk [vmem:[%s145 + $0xf8] sm:$0xff] %vm509, %v506
      %s542 = smul.u32 32, %s13
      %p543 = scmp.lt.s32.totalorder %s542, 63
      %s544 = scalar_select %p543, %s542, 63
      %s545 = smul.addr %s544, 8
      %s546 = scalar_lea.vmem %s2, %s545
      // Predicated region
      $region29: #{tpu_custom_call.1} parent=27 // pred_check
        %p547 = pneg %p78
      $region30: #{tpu_custom_call.1} parent=27 // pred_check_branch
        %549 = sbr.rel (%p547) target = $region32
      $region31: #{tpu_custom_call.1} parent=27 // pred_region
        %s550 = smul.u32 32, %s13
      $region32: #{tpu_custom_call.1} parent=27 // pred_fallthru
        _
    $region28: #{tpu_custom_call.1} parent=5 // pred_fallthru
      _
    %p551 = scmp.le.s32.totalorder 2, %s8
    // Predicated region
    $region33: #{tpu_custom_call.1} parent=5 // pred_check
      %p552 = pneg %p551
    $region34: #{tpu_custom_call.1} parent=5 // pred_check_branch
      %554 = sbr.rel (%p552) target = $region36
    $region35: #{tpu_custom_call.1} parent=5 // pred_region
      %s555 = ssub.s32 %s8, 2
      // Predicated region
      $region37: #{tpu_custom_call.1} parent=35 // pred_check
        %p556 = pneg %p84
      $region38: #{tpu_custom_call.1} parent=35 // pred_check_branch
        %558 = sbr.rel (%p556) target = $region40
      $region39: #{tpu_custom_call.1} parent=35 // pred_region
        %s559 = smul.u32 32, %s14
        %p560 = scmp.lt.s32.totalorder %s559, 63
        %s561 = scalar_select %p560, %s559, 63
        %s562 = smul.addr %s561, 8
        %s563 = scalar_lea.vmem %s2, %s562
      $region40: #{tpu_custom_call.1} parent=35 // pred_fallthru
        _
    $region36: #{tpu_custom_call.1} parent=5 // pred_fallthru
      _
  $region6: #{tpu_custom_call.1} parent=0 // loop_footer
    %s12 = sadd.s32 1, %s8
  $region7: #{tpu_custom_call.1} parent=0 // loop_footer_branch
    %7 = sbr.rel target = $region3
  $region8: #{tpu_custom_call.1} parent=0 // loop_exit
    _

</llo_original>
